<compile_context>
chip_gen: v5e
topology: v5e:2x2
jax: 0.10.0
libtpu: 0.0.40
codegen_flags: <defaults>
</compile_context>

<pallas_src>
import math

import jax
import jax.numpy as jnp
from jax import lax
from jax.experimental import pallas as pl
from jax.experimental.pallas import tpu as pltpu


def _round_up(x, m):
    return ((x + m - 1) // m) * m


def _make_mse_kernel(row_tile, sub_rows, L, rows_valid, steps_per_core,
                     needs_mask):
    """Builds the streaming sum((s-t)^2) kernel for a (rows, L) slab."""
    n_sub = row_tile // sub_rows

    def kernel(s_ref, t_ref, out_ref, acc_ref):
        p = pl.program_id(0)
        i = pl.program_id(1)

        @pl.when(i == 0)
        def _():
            acc_ref[...] = jnp.zeros_like(acc_ref)

        # Logical (unclamped) first row of this block within the (rows, L) slab.
        row_start = (p * steps_per_core + i) * row_tile

        def chunk(c, carry):
            start = pl.multiple_of(c * sub_rows, sub_rows)
            s = s_ref[pl.ds(start, sub_rows), :].astype(jnp.float32)
            t = t_ref[pl.ds(start, sub_rows), :].astype(jnp.float32)
            d = s - t
            sq = d * d
            if needs_mask:
                # Rows past `rows_valid` hold undefined data (partial block /
                # parallel-axis padding): drop them via select so NaN garbage
                # cannot leak into the sum.
                rid = lax.broadcasted_iota(jnp.int32, (sub_rows, 1), 0)
                valid = (rid + (row_start + start)) < rows_valid
                sq = jnp.where(valid, sq, 0.0)
            # Reduce only whole sublane-groups -> pure VPU vreg adds per step;
            # no per-step cross-lane (XLU) reduction.
            acc_ref[...] += sq.reshape(sub_rows // 8, 8, L).sum(axis=0)
            return carry

        lax.fori_loop(0, n_sub, chunk, 0, unroll=(n_sub <= 8))

        @pl.when(i == pl.num_programs(1) - 1)
        def _():
            # Single full cross-lane / cross-sublane reduction at the very end.
            out_ref[0, 0] = jnp.sum(acc_ref[...])

    return kernel


def embedding_mse(s_embed, t_embed, *,
                  target_block_bytes=4 * 1024 * 1024,
                  num_parallel=1):
    """Pallas equivalent of Embedding_mse.forward (mean-reduction MSE)."""
    assert s_embed.shape == t_embed.shape, "mse_loss requires matching shapes"

    n_elems = math.prod(s_embed.shape) if s_embed.shape else 1
    if n_elems == 0:
        # F.mse_loss(..., reduction='mean') over zero elements is NaN.
        return jnp.float32(jnp.nan)

    itemsize = max(jnp.dtype(s_embed.dtype).itemsize,
                   jnp.dtype(t_embed.dtype).itemsize)

    # ---- Lane-dense slab layout (no padding, no HBM copies). ----
    if n_elems % 128 == 0:
        L = 1024
        while n_elems % L:
            L //= 2
    else:
        # Fall back to the native trailing dim; block last-dim == full array
        # dim is always a legal BlockSpec (lanes are just under-used).
        L = s_embed.shape[-1] if s_embed.ndim else 1
    rows = n_elems // L
    Lp = _round_up(L, 128)              # lane-padded width (VMEM footprint)

    s2d = s_embed.reshape(rows, L)      # contiguous row-major: metadata only
    t2d = t_embed.reshape(rows, L)

    # ---- Row tiling: ~target_block_bytes per input block. ----
    sub_align = 8 * max(1, 4 // itemsize)            # f32:8  bf16:16  int8:32
    row_tile = max(sub_align, target_block_bytes // (Lp * itemsize))
    row_tile = _round_up(row_tile, sub_align)
    row_tile = min(row_tile, _round_up(rows, sub_align))

    # Bound in-kernel f32 intermediates: reduce in <=256-row chunks.
    sub_rows = row_tile
    for cand in (256, 128, 64, 32, 16, 8):
        if cand <= row_tile and row_tile % cand == 0:
            sub_rows = cand
            break

    steps_total = pl.cdiv(rows, row_tile)
    steps_per_core = pl.cdiv(steps_total, max(1, num_parallel))
    num_parallel = max(1, num_parallel)
    total_blocks = num_parallel * steps_per_core
    needs_mask = (total_blocks * row_tile) != rows

    if total_blocks > steps_total:
        # Extra blocks (parallel-axis padding) re-read the last real block;
        # the in-kernel row mask zeroes their contribution.
        def in_map(p, i):
            return (jnp.minimum(p * steps_per_core + i, steps_total - 1), 0)
    else:
        def in_map(p, i):
            return (p * steps_per_core + i, 0)

    kernel = _make_mse_kernel(row_tile, sub_rows, L, rows, steps_per_core,
                              needs_mask)

    # 2 inputs x 2 pipeline buffers + accumulator + headroom.
    block_bytes = row_tile * Lp * itemsize
    vmem_limit = int(min(64 * 1024 * 1024,
                         max(32 * 1024 * 1024,
                             4 * block_bytes + 4 * 1024 * 1024)))

    partials = pl.pallas_call(
        kernel,
        out_shape=jax.ShapeDtypeStruct((num_parallel, 1), jnp.float32),
        grid_spec=pltpu.PrefetchScalarGridSpec(
            num_scalar_prefetch=0,
            grid=(num_parallel, steps_per_core),
            in_specs=[
                pl.BlockSpec((row_tile, L), in_map),
                pl.BlockSpec((row_tile, L), in_map),
            ],
            out_specs=pl.BlockSpec((1, 1), lambda p, i: (p, 0),
                                   memory_space=pltpu.SMEM),
            scratch_shapes=[pltpu.VMEM((8, L), jnp.float32)],
        ),
        compiler_params=pltpu.CompilerParams(
            dimension_semantics=("parallel", "arbitrary"),
            vmem_limit_bytes=vmem_limit,
        ),
        cost_estimate=pl.CostEstimate(
            flops=3 * n_elems,
            transcendentals=0,
            bytes_accessed=n_elems * (jnp.dtype(s_embed.dtype).itemsize
                                      + jnp.dtype(t_embed.dtype).itemsize) + 4,
        ),
    )(s2d, t2d)

    return jnp.sum(partials) / jnp.float32(n_elems)


def _check(name, s, t, **kw):
    loss = embedding_mse(s, t, **kw)
    jax.block_until_ready(loss)
    ref = jnp.mean((s.astype(jnp.float32) - t.astype(jnp.float32)) ** 2)
    assert jnp.allclose(loss, ref, rtol=1e-5, atol=1e-6), (name, loss, ref)


if __name__ == "__main__":
    key = jax.random.PRNGKey(0)

    # 1) Shapes consistent with the module: [bsz, layer_num, max_len, hidden].
    bsz, layer_num, max_len, hidden = 2, 4, 8, 32
    k_s, k_t, k2s, k2t = jax.random.split(key, 4)
    s_embed = jax.random.normal(k_s, (bsz, layer_num, max_len, hidden),
                                jnp.float32)
    t_embed = jax.random.normal(k_t, (bsz, layer_num, max_len, hidden),
                                jnp.float32)
    _check("base_f32", s_embed, t_embed)

    # 2) Multi-step grid + ragged tail (forces small blocks + in-kernel mask).
    s2 = jax.random.normal(k2s, (2, 4, 37, 128), jnp.float32)
    t2 = jax.random.normal(k2t, (2, 4, 37, 128), jnp.float32)
    _check("multistep_masked", s2, t2, target_block_bytes=64 * 1024)

    # 3) bf16 inputs (upcast to f32 inside the kernel).
    s3 = s_embed.astype(jnp.bfloat16)
    t3 = t_embed.astype(jnp.bfloat16)
    _check("bf16", s3, t3)

    print("KERNEL_OK")
</pallas_src>

<mosaic_0001>
module attributes {stable_mosaic.version = 11 : i64} {
  func.func @kernel(%arg0: i32, %arg1: i32, %arg2: memref<8x1024xf32, #tpu.memory_space<vmem>>, %arg3: memref<8x1024xf32, #tpu.memory_space<vmem>>, %arg4: memref<1x1xf32, #tpu.memory_space<smem>>, %arg5: memref<8x1024xf32, #tpu.memory_space<vmem>>) attributes {dimension_semantics = [#tpu.dimension_semantics<parallel>, #tpu.dimension_semantics<arbitrary>], iteration_bounds = array<i64: 1, 1>, scalar_prefetch = 0 : i64, scratch_operands = 1 : i64, tpu.core_type = #tpu.core_type<tc>, window_params = [{transform_indices = @transform_0, window_bounds = array<i64: 8, 1024>}, {transform_indices = @transform_1, window_bounds = array<i64: 8, 1024>}, {transform_indices = @transform_2, window_bounds = array<i64: 1, 1>}]} {
    %c0_i32 = arith.constant 0 : i32
    %0 = arith.cmpi eq, %arg1, %c0_i32 : i32
    %1 = arith.extui %0 : i1 to i32
    %c0_i32_0 = arith.constant 0 : i32
    %2 = arith.cmpi ne, %1, %c0_i32_0 : i32
    scf.if %2 {
      %cst_12 = arith.constant 0.000000e+00 : f32
      %32 = vector.broadcast %cst_12 : f32 to vector<8x1024xf32>
      %c0_13 = arith.constant 0 : index
      %c0_14 = arith.constant 0 : index
      %33 = vector.load %arg5[%c0_13, %c0_14] : memref<8x1024xf32, #tpu.memory_space<vmem>>, vector<8x1024xf32>
      tpu.vector_store %arg5[%c0_13, %c0_14], %32 {strides = array<i32>} : memref<8x1024xf32, #tpu.memory_space<vmem>>, vector<8x1024xf32>,
    } else {
    }
    %c1_i32 = arith.constant 1 : i32
    %3 = arith.muli %arg0, %c1_i32 : i32
    %4 = arith.addi %3, %arg1 : i32
    %c8_i32 = arith.constant 8 : i32
    %5 = arith.muli %4, %c8_i32 : i32
    %c0_i32_1 = arith.constant 0 : i32
    %c8_i32_2 = arith.constant 8 : i32
    %6 = arith.muli %c0_i32_1, %c8_i32_2 : i32
    %7 = tpu.assume_multiple %6, 8 : i32
    %8 = arith.index_cast %7 : i32 to index
    %c0 = arith.constant 0 : index
    %9 = vector.load %arg2[%8, %c0] : memref<8x1024xf32, #tpu.memory_space<vmem>>, vector<8x1024xf32>
    %10 = arith.index_cast %7 : i32 to index
    %c0_3 = arith.constant 0 : index
    %11 = vector.load %arg3[%10, %c0_3] : memref<8x1024xf32, #tpu.memory_space<vmem>>, vector<8x1024xf32>
    %12 = arith.subf %9, %11 : vector<8x1024xf32>
    %13 = arith.mulf %12, %12 : vector<8x1024xf32>
    %14 = tpu.iota {dimensions = array<i32: 0>} : vector<8x1xi32>
    %15 = arith.addi %5, %7 : i32
    %16 = vector.broadcast %15 : i32 to vector<8x1xi32>
    %17 = arith.addi %14, %16 : vector<8x1xi32>
    %c2_i32 = arith.constant 2 : i32
    %18 = vector.broadcast %c2_i32 : i32 to vector<8x1xi32>
    %19 = arith.cmpi slt, %17, %18 : vector<8x1xi32>
    %cst = arith.constant 0.000000e+00 : f32
    %20 = vector.shape_cast %19 : vector<8x1xi1> to vector<8x1xi1>
    %21 = vector.broadcast %20 : vector<8x1xi1> to vector<8x1024xi1>
    %22 = vector.broadcast %cst : f32 to vector<8x1024xf32>
    %23 = arith.select %21, %13, %22 : vector<8x1024xi1>, vector<8x1024xf32>
    %c0_4 = arith.constant 0 : index
    %c0_5 = arith.constant 0 : index
    %24 = vector.load %arg5[%c0_4, %c0_5] : memref<8x1024xf32, #tpu.memory_space<vmem>>, vector<8x1024xf32>
    %25 = vector.shape_cast %23 : vector<8x1024xf32> to vector<1x8x1024xf32>
    %cst_6 = arith.constant dense<0.000000e+00> : vector<8x1024xf32>
    %26 = vector.multi_reduction <add>, %25, %cst_6 [0] : vector<1x8x1024xf32> to vector<8x1024xf32>
    %27 = arith.addf %24, %26 : vector<8x1024xf32>
    %c0_7 = arith.constant 0 : index
    %c0_8 = arith.constant 0 : index
    %28 = vector.load %arg5[%c0_7, %c0_8] : memref<8x1024xf32, #tpu.memory_space<vmem>>, vector<8x1024xf32>
    tpu.vector_store %arg5[%c0_7, %c0_8], %27 {strides = array<i32>} : memref<8x1024xf32, #tpu.memory_space<vmem>>, vector<8x1024xf32>,
    %c1_i32_9 = arith.constant 1 : i32
    %c0_i32_10 = arith.constant 0 : i32
    %29 = arith.cmpi eq, %arg1, %c0_i32_10 : i32
    %30 = arith.extui %29 : i1 to i32
    %c0_i32_11 = arith.constant 0 : i32
    %31 = arith.cmpi ne, %30, %c0_i32_11 : i32
    scf.if %31 {
      %c0_12 = arith.constant 0 : index
      %c0_13 = arith.constant 0 : index
      %32 = vector.load %arg5[%c0_12, %c0_13] : memref<8x1024xf32, #tpu.memory_space<vmem>>, vector<8x1024xf32>
      %33 = vector.shape_cast %32 : vector<8x1024xf32> to vector<1x8x1024xf32>
      %cst_14 = arith.constant dense<0.000000e+00> : vector<1xf32>
      %34 = vector.multi_reduction <add>, %33, %cst_14 [1, 2] : vector<1x8x1024xf32> to vector<1xf32>
      %35 = vector.shape_cast %34 : vector<1xf32> to vector<1x1x1xf32>
      %36 = vector.extract %35[0, 0, 0] : f32 from vector<1x1x1xf32>
      %c0_15 = arith.constant 0 : index
      %c0_16 = arith.constant 0 : index
      %37 = memref.load %arg4[%c0_15, %c0_16] : memref<1x1xf32, #tpu.memory_space<smem>>
      memref.store %36, %arg4[%c0_15, %c0_16] : memref<1x1xf32, #tpu.memory_space<smem>>
    } else {
    }
    return
  }
  func.func @transform_0(%arg0: i32, %arg1: i32) -> (i32, i32) {
    %c1_i32 = arith.constant 1 : i32
    %0 = arith.muli %arg0, %c1_i32 : i32
    %1 = arith.addi %0, %arg1 : i32
    %c0_i32 = arith.constant 0 : i32
    %c0_i32_0 = arith.constant 0 : i32
    return %1, %c0_i32 : i32, i32
  }
  func.func @transform_1(%arg0: i32, %arg1: i32) -> (i32, i32) {
    %c1_i32 = arith.constant 1 : i32
    %0 = arith.muli %arg0, %c1_i32 : i32
    %1 = arith.addi %0, %arg1 : i32
    %c0_i32 = arith.constant 0 : i32
    %c0_i32_0 = arith.constant 0 : i32
    return %1, %c0_i32 : i32, i32
  }
  func.func @transform_2(%arg0: i32, %arg1: i32) -> (i32, i32) {
    %c0_i32 = arith.constant 0 : i32
    %c0_i32_0 = arith.constant 0 : i32
    return %arg0, %c0_i32 : i32, i32
  }
}

</mosaic_0001>

<llo_original>
// kernel: tpu_custom_call.1
$region0: #{tpu_custom_call.1}
  #allocation0 [shape = 'u32[]', space=smem, size = 0x4, offset = 0x4, fixed_abs, tag = 'smem constant byte address 0x4 - core index']
  #allocation1 [shape = 'u32[72,128]{1,0:T(1,128)}', space=vmem, size = 0x9000, scoped, tag = 'internal scratch']
  #allocation2 [shape = 'f32[8,1024]{1,0:T(8,128)}', space=vmem, size = 0x8000, scoped, tag = 'scratch operand']
  %s0 = inlined_call_operand.hbm [shape: f32[2,1024], index: 0, kind: input, shape index: {}]
  %s1 = inlined_call_operand.hbm [shape: f32[2,1024], index: 1, kind: input, shape index: {}]
  %s2 = inlined_call_operand.hbm [shape: f32[1,1], index: 2, kind: output, shape index: {}]
  %s3 = sld [smem:[#allocation0]]
  $region34: #{tpu_custom_call.1} parent=0
    _
  %s5 = ssub.s32 1, %s3
  %s6 = scalar_select 0, %s5, %s3
  $region1: #{tpu_custom_call.1} parent=0
    #allocation3 [shape = 'u8[32768]{0}', space=vmem, size = 0x8000, scoped, tag = 'input window, operand 0, single buffered']
    #allocation4 [shape = 's32[1]{0}', space=sflag, size = 0x4, scoped, tag = 'scoped memory for tpu_custom_call.1']
    #allocation5 [shape = 's32[1]{0}', space=sflag, size = 0x4, scoped, tag = 'scoped memory for tpu_custom_call.1']
    #allocation6 [shape = 'u8[32768]{0}', space=vmem, size = 0x8000, scoped, tag = 'input window, operand 1, single buffered']
    #allocation7 [shape = 's32[1]{0}', space=sflag, size = 0x4, scoped, tag = 'scoped memory for tpu_custom_call.1']
    #allocation8 [shape = 'u8[512]{0}', space=smem, size = 0x200, scoped, tag = 'output window, operand 0, single buffered']
    %7 = vsyncpa [#allocation4], 0
    %8 = vsyncpa [#allocation7], 0
    %9 = vsyncpa [#allocation5], 0
    // Predicated region
    $region2: #{tpu_custom_call.1} parent=1 // pred_check
      _
    $region3: #{tpu_custom_call.1} parent=1 // pred_check_branch
      %11 = sbr.rel (0) target = $region5
    $region4: #{tpu_custom_call.1} parent=1 // pred_region
      %s12 = sadd.s32 0, 0
      %s13 = smul.u32 4, %s12
      %s14 = ssub.s32 1, %s13
      %s15 = smul.u32 2, %s14
      %s16 = smul.u32 %s15, 8
      %s17 = ssub.s32 64, %s16
      %s18 = sshll.u32 %s17, 4
      %19 = vsyncadd [#allocation4], %s18
      %p20 = scmp.ne.s32.totalorder 0, %s16
      %s21 = smul.addr %s13, 8
      %s22 = smul.addr %s21, 2
      %s23 = scalar_lea.hbm %s0, %s22
      %s24 = smul.u32 16, %s14
      %s25 = sshll.u32 %s23, 4
      %s26 = int_to_ptr.hbm [resolvable:$true] %s25
      %s27 = sshll.u32 [#allocation3], 4
      %s28 = int_to_ptr.vmem [resolvable:$true] %s27
      %s29 = sshll.u32 %s24, 4
      %33 = dma.hbm_to_vmem [thread:$0]  (%p20), %s26, %s29, %s28, [#allocation4], 256, 256, 16
    $region5: #{tpu_custom_call.1} parent=1 // pred_fallthru
      _
    // Predicated region
    $region6: #{tpu_custom_call.1} parent=1 // pred_check
      _
    $region7: #{tpu_custom_call.1} parent=1 // pred_check_branch
      %35 = sbr.rel (0) target = $region9
    $region8: #{tpu_custom_call.1} parent=1 // pred_region
      %s36 = sadd.s32 0, 0
      %s37 = smul.u32 4, %s36
      %s38 = ssub.s32 1, %s37
      %s39 = smul.u32 2, %s38
      %s40 = smul.u32 %s39, 8
      %s41 = ssub.s32 64, %s40
      %s42 = sshll.u32 %s41, 4
      %43 = vsyncadd [#allocation7], %s42
      %p44 = scmp.ne.s32.totalorder 0, %s40
      %s45 = smul.addr %s37, 8
      %s46 = smul.addr %s45, 2
      %s47 = scalar_lea.hbm %s1, %s46
      %s48 = smul.u32 16, %s38
      %s49 = sshll.u32 %s47, 4
      %s50 = int_to_ptr.hbm [resolvable:$true] %s49
      %s51 = sshll.u32 [#allocation6], 4
      %s52 = int_to_ptr.vmem [resolvable:$true] %s51
      %s53 = sshll.u32 %s48, 4
      %57 = dma.hbm_to_vmem [thread:$0]  (%p44), %s50, %s53, %s52, [#allocation7], 256, 256, 16
    $region9: #{tpu_custom_call.1} parent=1 // pred_fallthru
      _
    // Predicated region
    $region10: #{tpu_custom_call.1} parent=1 // pred_check
      _
    $region11: #{tpu_custom_call.1} parent=1 // pred_check_branch
      %59 = sbr.rel (0) target = $region13
    $region12: #{tpu_custom_call.1} parent=1 // pred_region
      %61 = dma.done [#allocation4], 1024
    $region13: #{tpu_custom_call.1} parent=1 // pred_fallthru
      _
    // Predicated region
    $region14: #{tpu_custom_call.1} parent=1 // pred_check
      _
    $region15: #{tpu_custom_call.1} parent=1 // pred_check_branch
      %63 = sbr.rel (0) target = $region17
    $region16: #{tpu_custom_call.1} parent=1 // pred_region
      %65 = dma.done [#allocation7], 1024
    $region17: #{tpu_custom_call.1} parent=1 // pred_fallthru
      _
    %s66 = sadd.s32 0, 0
    %s67 = smul.u32 4, %s66
    %s68 = ssub.s32 1, %s67
    %s69 = smul.u32 2, %s68
    %s70 = smul.u32 %s69, 8
    %s71 = sadd.s32 0, 0
    %s72 = smul.u32 4, %s71
    %s73 = ssub.s32 1, %s72
    %s74 = smul.u32 2, %s73
    %s75 = smul.u32 %s74, 8
    %p76 = scmp.eq.s32.totalorder 0, 0
    // Predicated region
    $region18: #{tpu_custom_call.1} parent=1 // pred_check
      %p77 = pneg %p76
    $region19: #{tpu_custom_call.1} parent=1 // pred_check_branch
      %79 = sbr.rel (%p77) target = $region21
    $region20: #{tpu_custom_call.1} parent=1 // pred_region
      %80 = vst [vmem:[#allocation2] sm:$0xff] 0.0
      %81 = vst [vmem:[#allocation2 + $0x8] sm:$0xff] 0.0
      %82 = vst [vmem:[#allocation2 + $0x10] sm:$0xff] 0.0
      %83 = vst [vmem:[#allocation2 + $0x18] sm:$0xff] 0.0
      %84 = vst [vmem:[#allocation2 + $0x20] sm:$0xff] 0.0
      %85 = vst [vmem:[#allocation2 + $0x28] sm:$0xff] 0.0
      %86 = vst [vmem:[#allocation2 + $0x30] sm:$0xff] 0.0
      %87 = vst [vmem:[#allocation2 + $0x38] sm:$0xff] 0.0
    $region21: #{tpu_custom_call.1} parent=1 // pred_fallthru
      _
    %s88 = sadd.s32 0, 0
    %s89 = smul.u32 %s88, 8
    %s90 = smul.u32 0, 8
    %s91 = smul.addr %s90, 2
    %s92 = scalar_lea.vmem [#allocation3], %s91
    %v93 = vld [vmem:[%s92] sm:$0xff]
    %v94 = vld [vmem:[%s92 + $0x8] sm:$0xff]
    %v95 = vld [vmem:[%s92 + $0x10] sm:$0xff]
    %v96 = vld [vmem:[%s92 + $0x18] sm:$0xff]
    %v97 = vld [vmem:[%s92 + $0x20] sm:$0xff]
    %v98 = vld [vmem:[%s92 + $0x28] sm:$0xff]
    %v99 = vld [vmem:[%s92 + $0x30] sm:$0xff]
    %v100 = vld [vmem:[%s92 + $0x38] sm:$0xff]
    %s101 = smul.addr %s90, 2
    %s102 = scalar_lea.vmem [#allocation6], %s101
    %v103 = vld [vmem:[%s102] sm:$0xff]
    %v104 = vld [vmem:[%s102 + $0x8] sm:$0xff]
    %v105 = vld [vmem:[%s102 + $0x10] sm:$0xff]
    %v106 = vld [vmem:[%s102 + $0x18] sm:$0xff]
    %v107 = vld [vmem:[%s102 + $0x20] sm:$0xff]
    %v108 = vld [vmem:[%s102 + $0x28] sm:$0xff]
    %v109 = vld [vmem:[%s102 + $0x30] sm:$0xff]
    %v110 = vld [vmem:[%s102 + $0x38] sm:$0xff]
    %v111 = vsub.f32 %v93, %v103
    %v112 = vsub.f32 %v94, %v104
    %v113 = vsub.f32 %v95, %v105
    %v114 = vsub.f32 %v96, %v106
    %v115 = vsub.f32 %v97, %v107
    %v116 = vsub.f32 %v98, %v108
    %v117 = vsub.f32 %v99, %v109
    %v118 = vsub.f32 %v100, %v110
    %v119 = vmul.f32 %v111, %v111
    %v120 = vmul.f32 %v112, %v112
    %v121 = vmul.f32 %v113, %v113
    %v122 = vmul.f32 %v114, %v114
    %v123 = vmul.f32 %v115, %v115
    %v124 = vmul.f32 %v116, %v116
    %v125 = vmul.f32 %v117, %v117
    %v126 = vmul.f32 %v118, %v118
    %v127 = vlaneseq
    %v128 = vshrl.u32 %v127, 7
    %s129 = sadd.s32 %s89, 0
    %v130 = vstv %s129
    %v131 = vadd.s32 %v128, %v130
    %vm132 = vcmp.lt.s32.totalorder %v131, 2
    %v133 = vsel %vm132, 1, 0
    %vm134 = vcmp.eq.s32.totalorder %v133, 1
    %143 = vst [vmem:[#allocation1] ss:$4 sm:$0xff] %v119
    %s144 = scalar_lea.vmem [#allocation1], 1
    %145 = vst [vmem:[%s144] ss:$4 sm:$0xff] %v121
    %s146 = scalar_lea.vmem [#allocation1], 2
    %147 = vst [vmem:[%s146] ss:$4 sm:$0xff] %v123
    %s148 = scalar_lea.vmem [#allocation1], 3
    %149 = vst [vmem:[%s148] ss:$4 sm:$0xff] %v125
    %s150 = scalar_lea.vmem [#allocation1], 32
    %151 = vst [vmem:[%s150] ss:$4 sm:$0xff] %v120
    %s152 = scalar_lea.vmem [#allocation1], 33
    %153 = vst [vmem:[%s152] ss:$4 sm:$0xff] %v122
    %s154 = scalar_lea.vmem [#allocation1], 34
    %155 = vst [vmem:[%s154] ss:$4 sm:$0xff] %v124
    %s156 = scalar_lea.vmem [#allocation1], 35
    %157 = vst [vmem:[%s156] ss:$4 sm:$0xff] %v126
    %v158 = vld.sshfl [vmem:[#allocation1] sm:$0xff pattern:$0x73625140]
    %v159 = vld.sshfl [vmem:[#allocation1 + $0x8] sm:$0xff pattern:$0x73625140]
    %v160 = vld.sshfl [vmem:[#allocation1 + $0x10] sm:$0xff pattern:$0x73625140]
    %v161 = vld.sshfl [vmem:[#allocation1 + $0x18] sm:$0xff pattern:$0x73625140]
    %v162 = vld.sshfl [vmem:[#allocation1 + $0x20] sm:$0xff pattern:$0x73625140]
    %v163 = vld.sshfl [vmem:[#allocation1 + $0x28] sm:$0xff pattern:$0x73625140]
    %v164 = vld.sshfl [vmem:[#allocation1 + $0x30] sm:$0xff pattern:$0x73625140]
    %v165 = vld.sshfl [vmem:[#allocation1 + $0x38] sm:$0xff pattern:$0x73625140]
    %v174 = vsel %vm134, %v158, 0.0
    %v175 = vsel %vm134, %v159, 0.0
    %v176 = vsel %vm134, %v160, 0.0
    %v177 = vsel %vm134, %v161, 0.0
    %v178 = vsel %vm134, %v162, 0.0
    %v179 = vsel %vm134, %v163, 0.0
    %v180 = vsel %vm134, %v164, 0.0
    %v181 = vsel %vm134, %v165, 0.0
    %v182 = vld [vmem:[#allocation2] sm:$0xff]
    %v183 = vld [vmem:[#allocation2 + $0x8] sm:$0xff]
    %v184 = vld [vmem:[#allocation2 + $0x10] sm:$0xff]
    %v185 = vld [vmem:[#allocation2 + $0x18] sm:$0xff]
    %v186 = vld [vmem:[#allocation2 + $0x20] sm:$0xff]
    %v187 = vld [vmem:[#allocation2 + $0x28] sm:$0xff]
    %v188 = vld [vmem:[#allocation2 + $0x30] sm:$0xff]
    %v189 = vld [vmem:[#allocation2 + $0x38] sm:$0xff]
    %v190 = vadd.f32 %v174, 0.0
    %v191 = vadd.f32 %v175, 0.0
    %v192 = vadd.f32 %v176, 0.0
    %v193 = vadd.f32 %v177, 0.0
    %v194 = vadd.f32 %v178, 0.0
    %v195 = vadd.f32 %v179, 0.0
    %v196 = vadd.f32 %v180, 0.0
    %v197 = vadd.f32 %v181, 0.0
    %v198 = vadd.f32 %v182, %v190
    %v199 = vadd.f32 %v183, %v191
    %v200 = vadd.f32 %v184, %v192
    %v201 = vadd.f32 %v185, %v193
    %v202 = vadd.f32 %v186, %v194
    %v203 = vadd.f32 %v187, %v195
    %v204 = vadd.f32 %v188, %v196
    %v205 = vadd.f32 %v189, %v197
    %206 = vst [vmem:[#allocation2] sm:$0xff] %v198
    %207 = vst [vmem:[#allocation2 + $0x8] sm:$0xff] %v199
    %208 = vst [vmem:[#allocation2 + $0x10] sm:$0xff] %v200
    %209 = vst [vmem:[#allocation2 + $0x18] sm:$0xff] %v201
    %210 = vst [vmem:[#allocation2 + $0x20] sm:$0xff] %v202
    %211 = vst [vmem:[#allocation2 + $0x28] sm:$0xff] %v203
    %212 = vst [vmem:[#allocation2 + $0x30] sm:$0xff] %v204
    %213 = vst [vmem:[#allocation2 + $0x38] sm:$0xff] %v205
    // Predicated region
    $region22: #{tpu_custom_call.1} parent=1 // pred_check
      %p214 = pneg %p76
    $region23: #{tpu_custom_call.1} parent=1 // pred_check_branch
      %216 = sbr.rel (%p214) target = $region25
    $region24: #{tpu_custom_call.1} parent=1 // pred_region
      %v217 = vld [vmem:[#allocation2] sm:$0xff]
      %v218 = vld [vmem:[#allocation2 + $0x8] sm:$0xff]
      %v219 = vld [vmem:[#allocation2 + $0x10] sm:$0xff]
      %v220 = vld [vmem:[#allocation2 + $0x18] sm:$0xff]
      %v221 = vld [vmem:[#allocation2 + $0x20] sm:$0xff]
      %v222 = vld [vmem:[#allocation2 + $0x28] sm:$0xff]
      %v223 = vld [vmem:[#allocation2 + $0x30] sm:$0xff]
      %v224 = vld [vmem:[#allocation2 + $0x38] sm:$0xff]
      %v225 = vadd.f32 %v217, %v218
      %v226 = vadd.f32 %v225, %v219
      %v227 = vadd.f32 %v226, %v220
      %v228 = vadd.f32 %v227, %v221
      %v229 = vadd.f32 %v228, %v222
      %v230 = vadd.f32 %v229, %v223
      %v231 = vadd.f32 %v230, %v224
      %232 = vadd.xlane.f32.xlu0 %v231
      %v233 = vpop.xlane.xlu0 %232
      %v234 = vrot.slane %v233, 4
      %v235 = vadd.f32 %v233, %v234
      %v236 = vrot.slane %v235, 2
      %v237 = vadd.f32 %v235, %v236
      %v238 = vrot.slane %v237, 1
      %v239 = vadd.f32 %v237, %v238
      %s240 = vtos %v239
      %s241 = scalar_lea.smem [#allocation8], 0
      %242 = sst [smem:[%s241]] %s240
    $region25: #{tpu_custom_call.1} parent=1 // pred_fallthru
      _
    // Predicated region
    $region26: #{tpu_custom_call.1} parent=1 // pred_check
      _
    $region27: #{tpu_custom_call.1} parent=1 // pred_check_branch
      %244 = sbr.rel (0) target = $region29
    $region28: #{tpu_custom_call.1} parent=1 // pred_region
      %246 = vsyncadd [#allocation5], 0
      %s248 = sshll.u32 %s2, 4
      %s249 = int_to_ptr.hbm [resolvable:$true] %s248
      %251 = dma.smem_to_hbm [#allocation8], 16, %s249, [#allocation5]
    $region29: #{tpu_custom_call.1} parent=1 // pred_fallthru
      _
    // Predicated region
    $region30: #{tpu_custom_call.1} parent=1 // pred_check
      _
    $region31: #{tpu_custom_call.1} parent=1 // pred_check_branch
      %253 = sbr.rel (0) target = $region33
    $region32: #{tpu_custom_call.1} parent=1 // pred_region
      %255 = dma.done [#allocation5], 16
    $region33: #{tpu_custom_call.1} parent=1 // pred_fallthru
      _
    %256 = sfence
    %257 = vsyncpa [#allocation4], 1
    %258 = vsyncpa [#allocation7], 1
    %259 = vsyncpa [#allocation5], 1

</llo_original>
